<compile_context>
chip_gen: v7x
topology: tpu7x:2x2x1
jax: 0.10.0
libtpu: 0.0.40
codegen_flags: <defaults>
</compile_context>

<pallas_src>
import jax
import jax.numpy as jnp
from jax.experimental import pallas as pl
from jax.experimental.pallas import tpu as pltpu


def _fixed_mlp_kernel(slab_ref, out_ref):
    # Packed slab layout (rows): 0 -> x, 1 -> b, 2:22 -> W (out,in), 22:42 -> rand_weight.
    x = slab_ref[0:1, :]      # (1, 20)
    b = slab_ref[1:2, :]      # (1, 20)
    w = slab_ref[2:22, :]     # (20, 20)  PyTorch (out, in) layout
    rw = slab_ref[22:42, :]   # (20, 20)  fixed random weight

    # x @ W^T without materializing W^T: contract lhs dim 1 with rhs dim 1.
    trans_b = (((1,), (1,)), ((), ()))

    h = jax.lax.dot_general(x, w, trans_b, preferred_element_type=jnp.float32) + b
    h = jnp.maximum(jnp.dot(h, rw, preferred_element_type=jnp.float32) + 1.0, 0.0)
    y = jax.lax.dot_general(h, w, trans_b, preferred_element_type=jnp.float32) + b

    s = jnp.sum(y, axis=1, keepdims=True)[0, 0]              # X.sum()
    a = jnp.sum(jnp.abs(y), axis=1, keepdims=True)[0, 0]     # X.abs().sum()

    # `while X.abs().sum() > 1: X /= 2` folded onto the two scalar reductions
    # (exact: /2 is a power-of-2 scaling).  Runs entirely in-kernel.
    def body(carry):
        a_c, s_c = carry
        return a_c * 0.5, s_c * 0.5

    _, s_final = jax.lax.while_loop(lambda c: c[0] > 1.0, body, (a, s))

    out_ref[0] = s_final      # single f32 scalar via SMEM


def fixed_hidden_mlp(x, w, b, rand_weight):
    """x: (1,20), w: (20,20) PyTorch (out,in) layout, b: (20,), rand_weight: (20,20)."""
    # Pack all operands into one slab so Pallas issues a single input DMA.
    slab = jnp.concatenate(
        [
            x.astype(jnp.float32),                    # row 0
            b.reshape(1, -1).astype(jnp.float32),     # row 1
            w.astype(jnp.float32),                    # rows 2:22  (untransposed)
            rand_weight.astype(jnp.float32),          # rows 22:42
        ],
        axis=0,
    )  # (42, 20)

    out = pl.pallas_call(
        _fixed_mlp_kernel,
        out_shape=jax.ShapeDtypeStruct((1,), jnp.float32),
        in_specs=[pl.BlockSpec(memory_space=pltpu.MemorySpace.VMEM)],
        out_specs=pl.BlockSpec(memory_space=pltpu.MemorySpace.SMEM),
    )(slab)

    return out[0]   # scalar == X.sum() of the PyTorch module
    # NOTE: if this module were applied to many rows, batch them into one
    # pallas_call (rows as the matmul M dim / a "parallel" grid axis) rather
    # than calling this per-(1,20)-row kernel repeatedly.


def _reference(x, w, b, rand_weight):
    h = x @ w.T + b
    h = jnp.maximum(h @ rand_weight + 1.0, 0.0)
    y = h @ w.T + b
    y = jax.lax.while_loop(lambda t: jnp.sum(jnp.abs(t)) > 1.0, lambda t: t / 2, y)
    return jnp.sum(y)


if __name__ == "__main__":
    key = jax.random.PRNGKey(0)
    kx, kw, kb, kr = jax.random.split(key, 4)

    # Module shapes: input X (1, 20), Linear(20, 20), rand_weight (20, 20).
    bound = 1.0 / (20.0 ** 0.5)   # nn.Linear default init U(-1/sqrt(in), 1/sqrt(in))
    X = jax.random.uniform(kx, (1, 20), jnp.float32)                      # torch.rand(1, 20)
    W = jax.random.uniform(kw, (20, 20), jnp.float32, minval=-bound, maxval=bound)
    b = jax.random.uniform(kb, (20,), jnp.float32, minval=-bound, maxval=bound)
    rand_weight = jax.random.uniform(kr, (20, 20), jnp.float32)           # torch.rand((20, 20))

    out = jax.block_until_ready(jax.jit(fixed_hidden_mlp)(X, W, b, rand_weight))
    ref = jax.block_until_ready(jax.jit(_reference)(X, W, b, rand_weight))

    assert jnp.isfinite(out), out
    assert jnp.allclose(out, ref, rtol=2e-2, atol=2e-2), (out, ref)

    print("KERNEL_OK")
</pallas_src>

<mosaic_0001>
module attributes {stable_mosaic.version = 11 : i64} {
  func.func @_fixed_mlp_kernel(%arg0: memref<42x20xf32, #tpu.memory_space<vmem>>, %arg1: memref<1xf32, #tpu.memory_space<smem>>) attributes {dimension_semantics = [], scalar_prefetch = 0 : i64, scratch_operands = 0 : i64, tpu.core_type = #tpu.core_type<tc>} {
    %c0 = arith.constant 0 : index
    %c0_0 = arith.constant 0 : index
    %0 = vector.load %arg0[%c0, %c0_0] : memref<42x20xf32, #tpu.memory_space<vmem>>, vector<1x20xf32>
    %c1 = arith.constant 1 : index
    %c0_1 = arith.constant 0 : index
    %1 = vector.load %arg0[%c1, %c0_1] : memref<42x20xf32, #tpu.memory_space<vmem>>, vector<1x20xf32>
    %c2 = arith.constant 2 : index
    %c0_2 = arith.constant 0 : index
    %2 = vector.load %arg0[%c2, %c0_2] : memref<42x20xf32, #tpu.memory_space<vmem>>, vector<20x20xf32>
    %c22 = arith.constant 22 : index
    %c0_3 = arith.constant 0 : index
    %3 = vector.load %arg0[%c22, %c0_3] : memref<42x20xf32, #tpu.memory_space<vmem>>, vector<20x20xf32>
    %cst = arith.constant dense<0.000000e+00> : vector<1x20xf32>
    %4 = tpu.matmul %0, %2, %cst {dimension_numbers = #tpu.dot_dimension_numbers<[1], [1], [0], [0], [0, 0, 1, 0], [], []>} : vector<1x20xf32>, vector<20x20xf32>, vector<1x20xf32> -> vector<1x20xf32>
    %5 = arith.addf %4, %1 : vector<1x20xf32>
    %cst_4 = arith.constant dense<0.000000e+00> : vector<1x20xf32>
    %6 = tpu.matmul %5, %3, %cst_4 {dimension_numbers = #tpu.dot_dimension_numbers<[1], [0], [0], [1], [0, 0, 1, 1], [], []>} : vector<1x20xf32>, vector<20x20xf32>, vector<1x20xf32> -> vector<1x20xf32>
    %cst_5 = arith.constant 1.000000e+00 : f32
    %7 = vector.broadcast %cst_5 : f32 to vector<1x20xf32>
    %8 = arith.addf %6, %7 : vector<1x20xf32>
    %cst_6 = arith.constant 0.000000e+00 : f32
    %9 = vector.broadcast %cst_6 : f32 to vector<1x20xf32>
    %10 = arith.maximumf %8, %9 : vector<1x20xf32>
    %cst_7 = arith.constant dense<0.000000e+00> : vector<1x20xf32>
    %11 = tpu.matmul %10, %2, %cst_7 {dimension_numbers = #tpu.dot_dimension_numbers<[1], [1], [0], [0], [0, 0, 1, 0], [], []>} : vector<1x20xf32>, vector<20x20xf32>, vector<1x20xf32> -> vector<1x20xf32>
    %12 = arith.addf %11, %1 : vector<1x20xf32>
    %cst_8 = arith.constant dense<0.000000e+00> : vector<1xf32>
    %13 = vector.multi_reduction <add>, %12, %cst_8 [1] : vector<1x20xf32> to vector<1xf32>
    %14 = vector.shape_cast %13 : vector<1xf32> to vector<1x1xf32>
    %15 = vector.extract %14[0, 0] : f32 from vector<1x1xf32>
    %16 = math.absf %12 : vector<1x20xf32>
    %cst_9 = arith.constant dense<0.000000e+00> : vector<1xf32>
    %17 = vector.multi_reduction <add>, %16, %cst_9 [1] : vector<1x20xf32> to vector<1xf32>
    %18 = vector.shape_cast %17 : vector<1xf32> to vector<1x1xf32>
    %19 = vector.extract %18[0, 0] : f32 from vector<1x1xf32>
    %20:2 = scf.while (%arg2 = %19, %arg3 = %15) : (f32, f32) -> (f32, f32) {
      %cst_11 = arith.constant 1.000000e+00 : f32
      %22 = arith.cmpf ogt, %arg2, %cst_11 : f32
      scf.condition(%22) %arg2, %arg3 : f32, f32
    } do {
    ^bb0(%arg2: f32, %arg3: f32):
      %cst_11 = arith.constant 5.000000e-01 : f32
      %22 = arith.mulf %arg2, %cst_11 : f32
      %cst_12 = arith.constant 5.000000e-01 : f32
      %23 = arith.mulf %arg3, %cst_12 : f32
      scf.yield %22, %23 : f32, f32
    }
    %c0_10 = arith.constant 0 : index
    %21 = memref.load %arg1[%c0_10] : memref<1xf32, #tpu.memory_space<smem>>
    memref.store %20#1, %arg1[%c0_10] : memref<1xf32, #tpu.memory_space<smem>>
    return
  }
}

</mosaic_0001>

<llo_original>
// kernel: fixed_hidden_mlp.1
$region0: #{fixed_hidden_mlp.1}
  #allocation0 [shape = 'u32[]', space=smem, size = 0x4, offset = 0x4, fixed_abs, tag = 'smem constant byte address 0x4 - core index']
  #allocation1 [shape = 'u32[144,128]{1,0:T(1,128)}', space=vmem, size = 0x12000, scoped, tag = 'internal scratch']
  %s0 = inlined_call_operand.vmem [shape: f32[42,20], index: 0, kind: input, shape index: {}]
  %s1 = inlined_call_operand.hbm [shape: f32[1], index: 1, kind: output, shape index: {}]
  %s2 = sld [smem:[#allocation0]]
  $region21: #{fixed_hidden_mlp.1} parent=0
    _
  %s4 = ssub.s32 1, %s2
  %s5 = scalar_select 0, %s4, %s2
  $region1: #{fixed_hidden_mlp.1} parent=0
    #allocation2 [shape = 'u8[512]{0}', space=smem, size = 0x200, scoped, tag = 'output window, operand 0, single buffered']
    #allocation3 [shape = 's32[1]{0}', space=sflag, size = 0x4, scoped, tag = 'scoped memory for fixed_hidden_mlp.1']
    %6 = vsyncpa [#allocation3], 0
    // Predicated region
    $region2: #{fixed_hidden_mlp.1} parent=1 // pred_check
      _
    $region3: #{fixed_hidden_mlp.1} parent=1 // pred_check_branch
      %8 = sbr.rel (0) target = $region5
    $region4: #{fixed_hidden_mlp.1} parent=1 // pred_region
      _
    $region5: #{fixed_hidden_mlp.1} parent=1 // pred_fallthru
      _
    %v9 = vld [vmem:[%s0] sm:$0x1]
    %v10 = vld [vmem:[%s0 + $0x1] sm:$0x1]
    %v11 = vld [vmem:[%s0 + $0x2] sm:$0xff]
    %v12 = vld [vmem:[%s0 + $0xa] sm:$0xff]
    %v13 = vld [vmem:[%s0 + $0x12] sm:$0xf]
    %v14 = vld [vmem:[%s0 + $0x16] sm:$0xff]
    %v15 = vld [vmem:[%s0 + $0x1e] sm:$0xff]
    %v16 = vld [vmem:[%s0 + $0x26] sm:$0xf]
    %vm17 = vcmask 162816
    %v19 = vsel %vm17, %v9, 0
    %v22 = vsel %vm17, %v11, 0
    %v25 = vsel %vm17, %v12, 0
    %v28 = vsel %vm17, %v13, 0
    %30 = vmatprep.subr.mxu0 0.0
    %31 = vmatpush1.xpose.msra.mxu0 %v22
    %32 = vmatprep.subr.mxu0 0.0
    %33 = vmatpush1.xpose.msra.mxu0 %v25
    %34 = vmatprep.subr.mxu0 0.0
    %35 = vmatpush1.xpose.msra.mxu0 %v28
    %36 = vmatprep.subr.mxu0 0.0
    %37 = vmatpush1.xpose.msra.mxu0 0.0
    %38 = vmatprep.subr.mxu0 0.0
    %39 = vmatpush1.xpose.msra.mxu0 0.0
    %40 = vmatprep.subr.mxu0 0.0
    %41 = vmatpush1.xpose.msra.mxu0 0.0
    %42 = vmatprep.subr.mxu0 0.0
    %43 = vmatpush1.xpose.msra.mxu0 0.0
    %44 = vmatprep.subr.mxu0 0.0
    %45 = vmatpush1.xpose.msra.mxu0 0.0
    %46 = vmatprep.subr.mxu0 0.0
    %47 = vmatpush1.xpose.msra.mxu0 0.0
    %48 = vmatprep.subr.mxu0 0.0
    %49 = vmatpush1.xpose.msra.mxu0 0.0
    %50 = vmatprep.subr.mxu0 0.0
    %51 = vmatpush1.xpose.msra.mxu0 0.0
    %52 = vmatprep.subr.mxu0 0.0
    %53 = vmatpush1.xpose.msra.mxu0 0.0
    %54 = vmatprep.subr.mxu0 0.0
    %55 = vmatpush1.xpose.msra.mxu0 0.0
    %56 = vmatprep.subr.mxu0 0.0
    %57 = vmatpush1.xpose.msra.mxu0 0.0
    %58 = vmatprep.subr.mxu0 0.0
    %59 = vmatpush1.xpose.msra.mxu0 0.0
    %60 = vmatprep.subr.mxu0 0.0
    %61 = vmatpush1.xpose.msra.mxu0 0.0
    %62 = vmatprep.subr.mxu0 0.0
    %63 = vmatpush1.xpose.msra.mxu0 0.0
    %64 = vmatprep.subr.mxu0 0.0
    %65 = vmatpush1.xpose.msra.mxu0 0.0
    %66 = vmatprep.subr.mxu0 0.0
    %67 = vmatpush1.xpose.msra.mxu0 0.0
    %68 = vmatprep.subr.mxu0 0.0
    %69 = vmatpush1.xpose.msra.mxu0 0.0
    %70 = vmatprep.subr.mxu0 0.0
    %71 = vmatpush1.xpose.msra.mxu0 0.0
    %72 = vmatprep.subr.mxu0 0.0
    %73 = vmatpush1.xpose.msra.mxu0 0.0
    %74 = vmatprep.subr.mxu0 0.0
    %75 = vmatpush1.xpose.msra.mxu0 0.0
    %76 = vmatprep.subr.mxu0 0.0
    %77 = vmatpush1.xpose.msra.mxu0 0.0
    %78 = vmatprep.subr.mxu0 0.0
    %79 = vmatpush1.xpose.msra.mxu0 0.0
    %80 = vmatprep.subr.mxu0 0.0
    %81 = vmatpush1.xpose.msra.mxu0 0.0
    %82 = vmatprep.subr.mxu0 0.0
    %83 = vmatpush1.xpose.msra.mxu0 0.0
    %84 = vmatprep.subr.mxu0 0.0
    %85 = vmatpush1.xpose.msra.mxu0 0.0
    %86 = vmatprep.subr.mxu0 0.0
    %87 = vmatpush1.xpose.msra.mxu0 0.0
    %88 = vmatprep.subr.mxu0 0.0
    %89 = vmatpush1.xpose.msra.mxu0 0.0
    %90 = vmatprep.subr.mxu0 0.0
    %91 = vmatpush1.xpose.msra.mxu0 0.0
    %92 = vmatprep.subr.mxu0 0.0
    %93 = vmatpush1.xpose.msra.mxu0 0.0
    %94 = vmatprep.mubr.f32.mxu0 0.0
    %95 = vmatmul.mubr.f32.gmra.mrb[0].mxu0 %v19
    %v96 = vpop.f32.mrb[0].mxu0
    %v97 = vadd.f32 %v10, %v96
    %v98 = vpop.f32.mrb[0].mxu0
    %99 = vdwg.mxu0
    %v101 = vsel %vm17, %v97, 0
    %vm103 = vcmask 1043456
    %v105 = vsel %vm103, %v16, 0
    %107 = vmatprep.subr.mxu0 0.0
    %108 = vmatpush1.msra.mxu0 %v14
    %109 = vmatprep.subr.mxu0 0.0
    %110 = vmatpush1.msra.mxu0 %v15
    %111 = vmatprep.subr.mxu0 0.0
    %112 = vmatpush1.msra.mxu0 %v105
    %113 = vmatprep.subr.mxu0 0.0
    %114 = vmatpush1.msra.mxu0 0.0
    %115 = vmatprep.subr.mxu0 0.0
    %116 = vmatpush1.msra.mxu0 0.0
    %117 = vmatprep.subr.mxu0 0.0
    %118 = vmatpush1.msra.mxu0 0.0
    %119 = vmatprep.subr.mxu0 0.0
    %120 = vmatpush1.msra.mxu0 0.0
    %121 = vmatprep.subr.mxu0 0.0
    %122 = vmatpush1.msra.mxu0 0.0
    %123 = vmatprep.subr.mxu0 0.0
    %124 = vmatpush1.msra.mxu0 0.0
    %125 = vmatprep.subr.mxu0 0.0
    %126 = vmatpush1.msra.mxu0 0.0
    %127 = vmatprep.subr.mxu0 0.0
    %128 = vmatpush1.msra.mxu0 0.0
    %129 = vmatprep.subr.mxu0 0.0
    %130 = vmatpush1.msra.mxu0 0.0
    %131 = vmatprep.subr.mxu0 0.0
    %132 = vmatpush1.msra.mxu0 0.0
    %133 = vmatprep.subr.mxu0 0.0
    %134 = vmatpush1.msra.mxu0 0.0
    %135 = vmatprep.subr.mxu0 0.0
    %136 = vmatpush1.msra.mxu0 0.0
    %137 = vmatprep.subr.mxu0 0.0
    %138 = vmatpush1.msra.mxu0 0.0
    %139 = vmatprep.subr.mxu0 0.0
    %140 = vmatpush1.msra.mxu0 0.0
    %141 = vmatprep.subr.mxu0 0.0
    %142 = vmatpush1.msra.mxu0 0.0
    %143 = vmatprep.subr.mxu0 0.0
    %144 = vmatpush1.msra.mxu0 0.0
    %145 = vmatprep.subr.mxu0 0.0
    %146 = vmatpush1.msra.mxu0 0.0
    %147 = vmatprep.subr.mxu0 0.0
    %148 = vmatpush1.msra.mxu0 0.0
    %149 = vmatprep.subr.mxu0 0.0
    %150 = vmatpush1.msra.mxu0 0.0
    %151 = vmatprep.subr.mxu0 0.0
    %152 = vmatpush1.msra.mxu0 0.0
    %153 = vmatprep.subr.mxu0 0.0
    %154 = vmatpush1.msra.mxu0 0.0
    %155 = vmatprep.subr.mxu0 0.0
    %156 = vmatpush1.msra.mxu0 0.0
    %157 = vmatprep.subr.mxu0 0.0
    %158 = vmatpush1.msra.mxu0 0.0
    %159 = vmatprep.subr.mxu0 0.0
    %160 = vmatpush1.msra.mxu0 0.0
    %161 = vmatprep.subr.mxu0 0.0
    %162 = vmatpush1.msra.mxu0 0.0
    %163 = vmatprep.subr.mxu0 0.0
    %164 = vmatpush1.msra.mxu0 0.0
    %165 = vmatprep.subr.mxu0 0.0
    %166 = vmatpush1.msra.mxu0 0.0
    %167 = vmatprep.subr.mxu0 0.0
    %168 = vmatpush1.msra.mxu0 0.0
    %169 = vmatprep.subr.mxu0 0.0
    %170 = vmatpush1.msra.mxu0 0.0
    %171 = vmatprep.mubr.f32.mxu0 0.0
    %172 = vmatmul.mubr.f32.gmra.mrb[0].mxu0 %v101
    %v173 = vpop.f32.mrb[0].mxu0
    %v174 = vadd.f32 1.0, %v173
    %v175 = vpop.f32.mrb[0].mxu0
    %176 = vdwg.mxu0
    %v177 = vmax.f32 %v174, 0.0
    %v179 = vsel %vm17, %v177, 0
    %181 = vmatprep.subr.mxu0 0.0
    %182 = vmatpush1.xpose.msra.mxu0 %v22
    %183 = vmatprep.subr.mxu0 0.0
    %184 = vmatpush1.xpose.msra.mxu0 %v25
    %185 = vmatprep.subr.mxu0 0.0
    %186 = vmatpush1.xpose.msra.mxu0 %v28
    %187 = vmatprep.subr.mxu0 0.0
    %188 = vmatpush1.xpose.msra.mxu0 0.0
    %189 = vmatprep.subr.mxu0 0.0
    %190 = vmatpush1.xpose.msra.mxu0 0.0
    %191 = vmatprep.subr.mxu0 0.0
    %192 = vmatpush1.xpose.msra.mxu0 0.0
    %193 = vmatprep.subr.mxu0 0.0
    %194 = vmatpush1.xpose.msra.mxu0 0.0
    %195 = vmatprep.subr.mxu0 0.0
    %196 = vmatpush1.xpose.msra.mxu0 0.0
    %197 = vmatprep.subr.mxu0 0.0
    %198 = vmatpush1.xpose.msra.mxu0 0.0
    %199 = vmatprep.subr.mxu0 0.0
    %200 = vmatpush1.xpose.msra.mxu0 0.0
    %201 = vmatprep.subr.mxu0 0.0
    %202 = vmatpush1.xpose.msra.mxu0 0.0
    %203 = vmatprep.subr.mxu0 0.0
    %204 = vmatpush1.xpose.msra.mxu0 0.0
    %205 = vmatprep.subr.mxu0 0.0
    %206 = vmatpush1.xpose.msra.mxu0 0.0
    %207 = vmatprep.subr.mxu0 0.0
    %208 = vmatpush1.xpose.msra.mxu0 0.0
    %209 = vmatprep.subr.mxu0 0.0
    %210 = vmatpush1.xpose.msra.mxu0 0.0
    %211 = vmatprep.subr.mxu0 0.0
    %212 = vmatpush1.xpose.msra.mxu0 0.0
    %213 = vmatprep.subr.mxu0 0.0
    %214 = vmatpush1.xpose.msra.mxu0 0.0
    %215 = vmatprep.subr.mxu0 0.0
    %216 = vmatpush1.xpose.msra.mxu0 0.0
    %217 = vmatprep.subr.mxu0 0.0
    %218 = vmatpush1.xpose.msra.mxu0 0.0
    %219 = vmatprep.subr.mxu0 0.0
    %220 = vmatpush1.xpose.msra.mxu0 0.0
    %221 = vmatprep.subr.mxu0 0.0
    %222 = vmatpush1.xpose.msra.mxu0 0.0
    %223 = vmatprep.subr.mxu0 0.0
    %224 = vmatpush1.xpose.msra.mxu0 0.0
    %225 = vmatprep.subr.mxu0 0.0
    %226 = vmatpush1.xpose.msra.mxu0 0.0
    %227 = vmatprep.subr.mxu0 0.0
    %228 = vmatpush1.xpose.msra.mxu0 0.0
    %229 = vmatprep.subr.mxu0 0.0
    %230 = vmatpush1.xpose.msra.mxu0 0.0
    %231 = vmatprep.subr.mxu0 0.0
    %232 = vmatpush1.xpose.msra.mxu0 0.0
    %233 = vmatprep.subr.mxu0 0.0
    %234 = vmatpush1.xpose.msra.mxu0 0.0
    %235 = vmatprep.subr.mxu0 0.0
    %236 = vmatpush1.xpose.msra.mxu0 0.0
    %237 = vmatprep.subr.mxu0 0.0
    %238 = vmatpush1.xpose.msra.mxu0 0.0
    %239 = vmatprep.subr.mxu0 0.0
    %240 = vmatpush1.xpose.msra.mxu0 0.0
    %241 = vmatprep.subr.mxu0 0.0
    %242 = vmatpush1.xpose.msra.mxu0 0.0
    %243 = vmatprep.subr.mxu0 0.0
    %244 = vmatpush1.xpose.msra.mxu0 0.0
    %245 = vmatprep.mubr.f32.mxu0 0.0
    %246 = vmatmul.mubr.f32.gmra.mrb[0].mxu0 %v179
    %v247 = vpop.f32.mrb[0].mxu0
    %v248 = vadd.f32 %v10, %v247
    %v249 = vpop.f32.mrb[0].mxu0
    %250 = vdwg.mxu0
    %vm251 = vcmask 155648
    %v252 = vsel %vm251, %v248, 0.0
    %253 = vadd.xlane.f32.xlu0 %v252
    %v254 = vpop.xlane.xlu0 %253
    %s255 = vtos %v254
    %v256 = vand.u32 2147483647, %v248
    %v257 = vsel %vm251, %v256, 0.0
    %258 = vadd.xlane.f32.xlu0 %v257
    %v259 = vpop.xlane.xlu0 %258
    %s260 = vtos %v259
    // While loop
    $region6: #{fixed_hidden_mlp.1} parent=1 // loop_pre_header
      _
    $region7: #{fixed_hidden_mlp.1} parent=1 // loop_header
      %s262 = sphi %s260, %s268
      %s263 = sphi %s255, %s269
      %p264 = scmp.gt.f32.partialorder %s262, 1.0
      %p265 = pneg %p264
    $region8: #{fixed_hidden_mlp.1} parent=1 // loop_header_branch
      %267 = sbr.rel (%p265) target = $region12
    $region9: #{fixed_hidden_mlp.1} parent=1 // loop_body
      %s268 = smul.f32 %s262, 0.5
      %s269 = smul.f32 %s263, 0.5
    $region10: #{fixed_hidden_mlp.1} parent=1 // loop_footer
      _
    $region11: #{fixed_hidden_mlp.1} parent=1 // loop_footer_branch
      %261 = sbr.rel target = $region7
    $region12: #{fixed_hidden_mlp.1} parent=1 // loop_exit
      _
    %s270 = scalar_lea.smem [#allocation2], 0
    %271 = sst [smem:[%s270]] %s263
    // Predicated region
    $region13: #{fixed_hidden_mlp.1} parent=1 // pred_check
      _
    $region14: #{fixed_hidden_mlp.1} parent=1 // pred_check_branch
      %273 = sbr.rel (0) target = $region16
    $region15: #{fixed_hidden_mlp.1} parent=1 // pred_region
      %s275 = ssub.s32 16, 16
      %276 = vsyncadd [#allocation3], %s275
      %279 = dma.smem_to_hbm [#allocation2], 16, %s1, [#allocation3]
    $region16: #{fixed_hidden_mlp.1} parent=1 // pred_fallthru
      _
    // Predicated region
    $region17: #{fixed_hidden_mlp.1} parent=1 // pred_check
      _
    $region18: #{fixed_hidden_mlp.1} parent=1 // pred_check_branch
      %281 = sbr.rel (0) target = $region20
    $region19: #{fixed_hidden_mlp.1} parent=1 // pred_region
      %282 = dma.done [#allocation3], 16
    $region20: #{fixed_hidden_mlp.1} parent=1 // pred_fallthru
      _
    %283 = sfence
    %284 = vsyncpa [#allocation3], 1

</llo_original>
